<compile_context>
chip_gen: v7x
topology: tpu7x:2x2x1
jax: 0.10.0
libtpu: 0.0.40
codegen_flags: <defaults>
</compile_context>

<pallas_src>
import functools

import jax
import jax.numpy as jnp
from jax.experimental import pallas as pl
from jax.experimental.pallas import tpu as pltpu

BN_EPS = 1e-5
L2_EPS = 1e-12
LEAKY_SLOPE = 0.01


def _round_up(x, m):
    return -(-x // m) * m


def _divisor_tile(total, target, align=8):
    """Largest multiple of `align` that divides `total` and is <= target."""
    t = max(align, min(target, total))
    t -= t % align
    while total % t:
        t -= align
    return t


def choose_tiles(n, *, tile_m=512, tile_k=2048):
    """Aggregation tile sizes: 256-aligned (v6e/v7x MXU is 2x256^2), capped at the
    padded node count, and tile_k kept a multiple of tile_m so a single row padding
    (to tile_k) also satisfies the tile_m-blocked r/out BlockSpecs."""
    cap = _round_up(n, 256)
    tile_m = min(tile_m, cap)
    tile_k = min(max(tile_k, tile_m), cap)
    tile_k -= tile_k % tile_m
    return tile_m, tile_k


def prepare_a_hat(a_hat, *, tile_m, tile_k):
    """Cast A_hat to bf16 FIRST (halves the padding-pass traffic), then pad rows to a
    multiple of tile_m and columns to a multiple of tile_k (independently, no lcm).
    A_hat is reused across GNN layers / iterations, so call this ONCE and cache the
    result — doing it per forward call costs more HBM bytes than the kernel itself.

    NOTE: padded columns must stay zero — padded rows of p are nonzero (they pick up
    the folded bias) and rely on the matching zero A_hat columns for correctness."""
    n = a_hat.shape[0]
    n_pad_m = _round_up(n, tile_m)
    n_pad_k = _round_up(n, tile_k)
    a = a_hat.astype(jnp.bfloat16)
    if (n_pad_m, n_pad_k) != a.shape:
        a = jnp.pad(a, ((0, n_pad_m - n), (0, n_pad_k - n)))
    return a


# --------------------------------------------------------------------------
# Kernel 1: per-row-tile  L2-normalize + fused projection  xn @ [W | Wres]
# (BN affine already folded into wf/cf in the wrapper.)
# --------------------------------------------------------------------------
def project_kernel(x_ref, wf_ref, cf_ref, p_ref, r_ref):
    x = x_ref[...].astype(jnp.float32)                               # [PT, Fin]

    # F.normalize: xn = x / max(||x||_2, 1e-12) == x * rsqrt(max(||x||^2, 1e-24))
    sq = jnp.sum(x * x, axis=1, keepdims=True)                       # [PT, 1]
    inv_norm = jax.lax.rsqrt(jnp.maximum(sq, L2_EPS * L2_EPS))
    xn = (x * inv_norm).astype(jnp.bfloat16)                         # bf16 MXU operand

    # One bf16 MXU pass for both projections, f32 accumulation + f32 folded bias.
    pcat = jnp.dot(xn, wf_ref[...], preferred_element_type=jnp.float32) + cf_ref[...]

    f_out = p_ref.shape[1]
    p_ref[...] = pcat[:, :f_out].astype(p_ref.dtype)                 # bf16, streamed later
    r_ref[...] = pcat[:, f_out:]                                     # f32 residual


# --------------------------------------------------------------------------
# Kernel 2: tiled  A_hat @ p  accumulated directly into the f32 output block,
# fused epilogue (residual + bias + LeakyReLU) at the last reduction step.
# --------------------------------------------------------------------------
def aggregate_kernel(a_ref, p_ref, r_ref, b_ref, out_ref, *, p_resident):
    k = pl.program_id(1)

    @pl.when(k == 0)
    def _():
        out_ref[...] = jnp.zeros_like(out_ref)

    if p_resident:
        # p lives fully in VMEM; slice the k-th stripe in-kernel.
        tk = a_ref.shape[1]
        off = pl.multiple_of(k * tk, tk)
        p_blk = p_ref[pl.ds(off, tk), :]
    else:
        p_blk = p_ref[...]

    out_ref[...] += jnp.dot(a_ref[...], p_blk, preferred_element_type=jnp.float32)

    @pl.when(k == pl.num_programs(1) - 1)
    def _():
        v = out_ref[...] + r_ref[...] + b_ref[...]
        # LeakyReLU(0.01); dropout is identity at inference.
        # TODO(synk): training-mode dropout (inverted masking) not implemented.
        out_ref[...] = jnp.where(v > 0, v, LEAKY_SLOPE * v)


# --------------------------------------------------------------------------
# Wrapper
# --------------------------------------------------------------------------
def gnn_forward(x, a_prepared, params, *, tile_m, tile_k, proj_tile=1024):
    n, f_in = x.shape
    f_out = params["w"].shape[1]
    n_pad_m, n_pad_k = a_prepared.shape
    assert tile_k % tile_m == 0
    assert n_pad_m == _round_up(n, tile_m) and n_pad_k == _round_up(n, tile_k)

    # ---- fold BatchNorm1d (eval) into the projection weights / bias ----
    scale = params["gamma"].reshape(-1) * jax.lax.rsqrt(params["var"].reshape(-1) + BN_EPS)
    shift = params["beta"].reshape(-1) - params["mean"].reshape(-1) * scale
    w_cat = jnp.concatenate([params["w"], params["wres"]], axis=1)        # [Fin, 2*Fout]
    w_fold = (scale[:, None] * w_cat).astype(jnp.bfloat16)                # bf16 MXU operand
    c_fold = (shift @ w_cat)[None, :].astype(jnp.float32)                 # [1, 2*Fout]
    b_comb = (params["b"] + params["bres"]).reshape(1, f_out).astype(jnp.float32)

    # ---- pad nodes to n_pad_k (multiple of both tile_k and tile_m) ----
    # Padded (zero) rows of x still receive the folded bias c_fold, so padded rows
    # of p/r are nonzero; this is benign because the matching A_hat columns are
    # zero and padded output rows are sliced off at the end.
    if n_pad_k != n:
        x = jnp.pad(x, ((0, n_pad_k - n), (0, 0)))

    # ---- kernel 1: projection, large row tiles decoupled from tile_m ----
    pt = _divisor_tile(n_pad_k, proj_tile)
    p, r = pl.pallas_call(
        project_kernel,
        out_shape=(jax.ShapeDtypeStruct((n_pad_k, f_out), jnp.bfloat16),
                   jax.ShapeDtypeStruct((n_pad_k, f_out), jnp.float32)),
        grid=(n_pad_k // pt,),
        in_specs=[
            pl.BlockSpec((pt, f_in), lambda i: (i, 0)),
            pl.BlockSpec((f_in, 2 * f_out), lambda i: (0, 0)),   # small, resident
            pl.BlockSpec((1, 2 * f_out), lambda i: (0, 0)),
        ],
        out_specs=(pl.BlockSpec((pt, f_out), lambda i: (i, 0)),
                   pl.BlockSpec((pt, f_out), lambda i: (i, 0))),
        compiler_params=pltpu.CompilerParams(
            dimension_semantics=("parallel",)),
    )(x.astype(jnp.float32), w_fold, c_fold)

    # ---- kernel 2: tiled aggregation A_hat @ p, p VMEM-resident when it fits ----
    # VMEM estimate (assume double-buffered) — conservative for v7x (64 MiB physical).
    resident_bytes = (2 * n_pad_k * f_out * 2            # resident p (bf16)
                      + 2 * tile_m * tile_k * 2          # A_hat tiles (bf16)
                      + 2 * tile_m * f_out * (4 + 4)     # out + r tiles (f32)
                      + 4 * 2 * f_out)                   # bias
    p_resident = resident_bytes <= 24 * 1024 * 1024

    if p_resident:
        p_spec = pl.BlockSpec((n_pad_k, f_out), lambda i, k: (0, 0))   # fetched once
    else:
        p_spec = pl.BlockSpec((tile_k, f_out), lambda i, k: (k, 0))    # streamed per k

    out = pl.pallas_call(
        functools.partial(aggregate_kernel, p_resident=p_resident),
        out_shape=jax.ShapeDtypeStruct((n_pad_m, f_out), jnp.float32),
        grid=(n_pad_m // tile_m, n_pad_k // tile_k),
        in_specs=[
            pl.BlockSpec((tile_m, tile_k), lambda i, k: (i, k)),   # A_hat tile (bf16)
            p_spec,                                                # projection (bf16)
            pl.BlockSpec((tile_m, f_out), lambda i, k: (i, 0)),    # residual (f32)
            pl.BlockSpec((1, f_out), lambda i, k: (0, 0)),         # combined bias
        ],
        out_specs=pl.BlockSpec((tile_m, f_out), lambda i, k: (i, 0)),
        compiler_params=pltpu.CompilerParams(
            dimension_semantics=("parallel", "arbitrary"),
            vmem_limit_bytes=32 * 1024 * 1024),
    )(a_prepared, p, r, b_comb)

    return out[:n]


# --------------------------------------------------------------------------
# Pure-JAX reference of the same forward pass (unfolded, f32 throughout).
# --------------------------------------------------------------------------
def gnn_reference(x, a_hat, params):
    norm = jnp.maximum(jnp.sqrt(jnp.sum(x * x, axis=1, keepdims=True)), L2_EPS)
    xn = x / norm
    xb = ((xn - params["mean"]) * jax.lax.rsqrt(params["var"] + BN_EPS)
          * params["gamma"] + params["beta"])
    out = a_hat @ (xb @ params["w"]) + params["b"]
    out = out + xb @ params["wres"] + params["bres"]
    return jnp.where(out > 0, out, LEAKY_SLOPE * out)


if __name__ == "__main__":
    # Module implies 128-wide features (GNN(input=128, output=128)); small node count.
    N, F_IN, F_OUT = 256, 128, 128

    key = jax.random.PRNGKey(0)
    k_x, k_a, k_w, k_wres, k_g, k_b, k_m, k_v, k_bb, k_br = jax.random.split(key, 10)

    # Node features.
    x = jax.random.normal(k_x, (N, F_IN), dtype=jnp.float32)

    # Deterministic symmetric adjacency -> GCN-normalized A_hat = D^-1/2 (A+I) D^-1/2.
    a_rand = jax.random.uniform(k_a, (N, N))
    adj = ((a_rand + a_rand.T) > 1.4).astype(jnp.float32) * (1.0 - jnp.eye(N, dtype=jnp.float32))
    adj_sl = adj + jnp.eye(N, dtype=jnp.float32)
    deg = jnp.sum(adj_sl, axis=1)
    d_inv_sqrt = 1.0 / jnp.sqrt(jnp.maximum(deg, 1.0))
    a_hat = adj_sl * d_inv_sqrt[:, None] * d_inv_sqrt[None, :]

    # Parameters (non-trivial BN running stats to exercise the weight folding).
    params = {
        "gamma": jax.random.uniform(k_g, (1, F_IN), jnp.float32, 0.5, 1.5),
        "beta": 0.1 * jax.random.normal(k_b, (1, F_IN), jnp.float32),
        "mean": 0.1 * jax.random.normal(k_m, (1, F_IN), jnp.float32),
        "var": jax.random.uniform(k_v, (1, F_IN), jnp.float32, 0.5, 1.5),
        # GCNConv(input, output) weight [F_in, F_out] + bias [F_out].
        "w": jax.random.normal(k_w, (F_IN, F_OUT), jnp.float32) / jnp.sqrt(F_IN),
        "b": 0.1 * jax.random.normal(k_bb, (1, F_OUT), jnp.float32),
        # res=True: nn.Linear(input, output).
        "wres": jax.random.normal(k_wres, (F_IN, F_OUT), jnp.float32) / jnp.sqrt(F_IN),
        "bres": 0.1 * jax.random.normal(k_br, (1, F_OUT), jnp.float32),
    }

    # A_hat is reused across all MPNN layers / forward calls -> prepare it ONCE.
    tile_m, tile_k = choose_tiles(N)
    a_prep = prepare_a_hat(a_hat, tile_m=tile_m, tile_k=tile_k)
    jax.block_until_ready(a_prep)

    out = gnn_forward(x, a_prep, params, tile_m=tile_m, tile_k=tile_k)
    jax.block_until_ready(out)

    ref = gnn_reference(x, a_hat, params)
    assert out.shape == (N, F_OUT)
    assert jnp.allclose(out, ref, atol=2e-2, rtol=2e-2), float(jnp.max(jnp.abs(out - ref)))

    print("KERNEL_OK")
</pallas_src>

<mosaic_0001>
module attributes {stable_mosaic.version = 11 : i64} {
  func.func @project_kernel(%arg0: i32, %arg1: memref<256x128xf32, #tpu.memory_space<vmem>>, %arg2: memref<128x256xbf16, #tpu.memory_space<vmem>>, %arg3: memref<1x256xf32, #tpu.memory_space<vmem>>, %arg4: memref<256x128xbf16, #tpu.memory_space<vmem>>, %arg5: memref<256x128xf32, #tpu.memory_space<vmem>>) attributes {dimension_semantics = [#tpu.dimension_semantics<parallel>], iteration_bounds = array<i64: 1>, scalar_prefetch = 0 : i64, scratch_operands = 0 : i64, tpu.core_type = #tpu.core_type<tc>, window_params = [{transform_indices = @transform_0, window_bounds = array<i64: 256, 128>}, {pipeline_mode = #tpu.pipeline_mode<synchronous>, transform_indices = @transform_1, window_bounds = array<i64: 128, 256>}, {pipeline_mode = #tpu.pipeline_mode<synchronous>, transform_indices = @transform_2, window_bounds = array<i64: 1, 256>}, {transform_indices = @transform_3, window_bounds = array<i64: 256, 128>}, {transform_indices = @transform_4, window_bounds = array<i64: 256, 128>}]} {
    %c0 = arith.constant 0 : index
    %c0_0 = arith.constant 0 : index
    %0 = vector.load %arg1[%c0, %c0_0] : memref<256x128xf32, #tpu.memory_space<vmem>>, vector<256x128xf32>
    %1 = arith.mulf %0, %0 : vector<256x128xf32>
    %cst = arith.constant dense<0.000000e+00> : vector<256xf32>
    %2 = vector.multi_reduction <add>, %1, %cst [1] : vector<256x128xf32> to vector<256xf32>
    %3 = vector.shape_cast %2 : vector<256xf32> to vector<256x1xf32>
    %cst_1 = arith.constant 1.000000e-24 : f32
    %4 = vector.broadcast %cst_1 : f32 to vector<256x1xf32>
    %5 = arith.maximumf %3, %4 : vector<256x1xf32>
    %6 = math.rsqrt %5 : vector<256x1xf32>
    %7 = vector.broadcast %6 : vector<256x1xf32> to vector<256x128xf32>
    %8 = arith.mulf %0, %7 : vector<256x128xf32>
    %9 = arith.truncf %8 : vector<256x128xf32> to vector<256x128xbf16>
    %c0_2 = arith.constant 0 : index
    %c0_3 = arith.constant 0 : index
    %10 = vector.load %arg2[%c0_2, %c0_3] : memref<128x256xbf16, #tpu.memory_space<vmem>>, vector<128x256xbf16>
    %cst_4 = arith.constant dense<0.000000e+00> : vector<256x256xf32>
    %11 = tpu.matmul %9, %10, %cst_4 {dimension_numbers = #tpu.dot_dimension_numbers<[1], [0], [0], [1], [0, 0, 1, 1], [], []>} : vector<256x128xbf16>, vector<128x256xbf16>, vector<256x256xf32> -> vector<256x256xf32>
    %c0_5 = arith.constant 0 : index
    %c0_6 = arith.constant 0 : index
    %12 = vector.load %arg3[%c0_5, %c0_6] : memref<1x256xf32, #tpu.memory_space<vmem>>, vector<1x256xf32>
    %13 = vector.broadcast %12 : vector<1x256xf32> to vector<256x256xf32>
    %14 = arith.addf %11, %13 : vector<256x256xf32>
    %15 = vector.extract_strided_slice %14 {offsets = [0, 0], sizes = [256, 128], strides = [1, 1]} : vector<256x256xf32> to vector<256x128xf32>
    %16 = arith.truncf %15 : vector<256x128xf32> to vector<256x128xbf16>
    %c0_7 = arith.constant 0 : index
    %c0_8 = arith.constant 0 : index
    %17 = vector.load %arg4[%c0_7, %c0_8] : memref<256x128xbf16, #tpu.memory_space<vmem>>, vector<256x128xbf16>
    tpu.vector_store %arg4[%c0_7, %c0_8], %16 {strides = array<i32>} : memref<256x128xbf16, #tpu.memory_space<vmem>>, vector<256x128xbf16>,
    %18 = vector.extract_strided_slice %14 {offsets = [0, 128], sizes = [256, 128], strides = [1, 1]} : vector<256x256xf32> to vector<256x128xf32>
    %c0_9 = arith.constant 0 : index
    %c0_10 = arith.constant 0 : index
    %19 = vector.load %arg5[%c0_9, %c0_10] : memref<256x128xf32, #tpu.memory_space<vmem>>, vector<256x128xf32>
    tpu.vector_store %arg5[%c0_9, %c0_10], %18 {strides = array<i32>} : memref<256x128xf32, #tpu.memory_space<vmem>>, vector<256x128xf32>,
    return
  }
  func.func @transform_0(%arg0: i32) -> (i32, i32) {
    %c0_i32 = arith.constant 0 : i32
    %c0_i32_0 = arith.constant 0 : i32
    return %arg0, %c0_i32 : i32, i32
  }
  func.func @transform_1(%arg0: i32) -> (i32, i32) {
    %c0_i32 = arith.constant 0 : i32
    %c0_i32_0 = arith.constant 0 : i32
    %c0_i32_1 = arith.constant 0 : i32
    return %c0_i32, %c0_i32_0 : i32, i32
  }
  func.func @transform_2(%arg0: i32) -> (i32, i32) {
    %c0_i32 = arith.constant 0 : i32
    %c0_i32_0 = arith.constant 0 : i32
    %c0_i32_1 = arith.constant 0 : i32
    return %c0_i32, %c0_i32_0 : i32, i32
  }
  func.func @transform_3(%arg0: i32) -> (i32, i32) {
    %c0_i32 = arith.constant 0 : i32
    %c0_i32_0 = arith.constant 0 : i32
    return %arg0, %c0_i32 : i32, i32
  }
  func.func @transform_4(%arg0: i32) -> (i32, i32) {
    %c0_i32 = arith.constant 0 : i32
    %c0_i32_0 = arith.constant 0 : i32
    return %arg0, %c0_i32 : i32, i32
  }
}

</mosaic_0001>

<llo_original>
// kernel: tpu_custom_call.1
$region0: #{tpu_custom_call.1}
  #allocation0 [shape = 'u32[]', space=smem, size = 0x4, offset = 0x4, fixed_abs, tag = 'smem constant byte address 0x4 - core index']
  #allocation1 [shape = 'u32[144,128]{1,0:T(1,128)}', space=vmem, size = 0x12000, scoped, tag = 'internal scratch']
  %s0 = inlined_call_operand.hbm [shape: f32[256,128], index: 0, kind: input, shape index: {}]
  %s1 = inlined_call_operand.hbm [shape: bf16[128,256], index: 1, kind: input, shape index: {}]
  %s2 = inlined_call_operand.vmem [shape: f32[1,256], index: 2, kind: input, shape index: {}]
  %s3 = inlined_call_operand.hbm [shape: bf16[256,128], index: 3, kind: output, shape index: {0}]
  %s4 = inlined_call_operand.hbm [shape: f32[256,128], index: 4, kind: output, shape index: {1}]
  %5 = xla_tuple %s3, %s4
  %s6 = sld [smem:[#allocation0]]
  $region38: #{tpu_custom_call.1} parent=0
    _
  %s8 = ssub.s32 1, %s6
  %s9 = scalar_select 0, %s8, %s6
  $region1: #{tpu_custom_call.1} parent=0
    #allocation2 [shape = 'u8[131072]{0}', space=vmem, size = 0x20000, scoped, tag = 'input window, operand 0, single buffered']
    #allocation3 [shape = 's32[1]{0}', space=sflag, size = 0x4, scoped, tag = 'scoped memory for tpu_custom_call.1']
    #allocation4 [shape = 's32[1]{0}', space=sflag, size = 0x4, scoped, tag = 'scoped memory for tpu_custom_call.1']
    #allocation5 [shape = 'u8[65536]{0}', space=vmem, size = 0x10000, scoped, tag = 'input window, operand 1, single buffered']
    #allocation6 [shape = 's32[1]{0}', space=sflag, size = 0x4, scoped, tag = 'scoped memory for tpu_custom_call.1']
    #allocation7 [shape = 'u8[65536]{0}', space=vmem, size = 0x10000, scoped, tag = 'output window, operand 0, single buffered']
    #allocation8 [shape = 'u8[131072]{0}', space=vmem, size = 0x20000, scoped, tag = 'output window, operand 1, single buffered']
    #allocation9 [shape = 's32[1]{0}', space=sflag, size = 0x4, scoped, tag = 'scoped memory for tpu_custom_call.1']
    %10 = vsyncpa [#allocation3], 0
    %11 = vsyncpa [#allocation6], 0
    %12 = vsyncpa [#allocation4], 0
    %13 = vsyncpa [#allocation9], 0
    // Predicated region
    $region2: #{tpu_custom_call.1} parent=1 // pred_check
      _
    $region3: #{tpu_custom_call.1} parent=1 // pred_check_branch
      %15 = sbr.rel (0) target = $region5
    $region4: #{tpu_custom_call.1} parent=1 // pred_region
      %s17 = ssub.s32 4096, 4096
      %18 = vsyncadd [#allocation3], %s17
      %s19 = sshll.u32 [#allocation2], 4
      %s20 = int_to_ptr.vmem [resolvable:$true] %s19
      %25 = dma.hbm_to_vmem [thread:$0]  %s0, 4096, %s20, [#allocation3], 128, 128, 8
    $region5: #{tpu_custom_call.1} parent=1 // pred_fallthru
      _
    // Predicated region
    $region6: #{tpu_custom_call.1} parent=1 // pred_check
      _
    $region7: #{tpu_custom_call.1} parent=1 // pred_check_branch
      %27 = sbr.rel (0) target = $region9
    $region8: #{tpu_custom_call.1} parent=1 // pred_region
      %s29 = ssub.s32 2048, 2048
      %30 = vsyncadd [#allocation6], %s29
      %s31 = sshll.u32 [#allocation5], 4
      %s32 = int_to_ptr.vmem [resolvable:$true] %s31
      %37 = dma.hbm_to_vmem [thread:$0]  %s1, 2048, %s32, [#allocation6], 128, 128, 8
    $region9: #{tpu_custom_call.1} parent=1 // pred_fallthru
      _
    // Predicated region
    $region10: #{tpu_custom_call.1} parent=1 // pred_check
      _
    $region11: #{tpu_custom_call.1} parent=1 // pred_check_branch
      %39 = sbr.rel (0) target = $region13
    $region12: #{tpu_custom_call.1} parent=1 // pred_region
      _
    $region13: #{tpu_custom_call.1} parent=1 // pred_fallthru
      _
    // Predicated region
    $region14: #{tpu_custom_call.1} parent=1 // pred_check
      _
    $region15: #{tpu_custom_call.1} parent=1 // pred_check_branch
      %41 = sbr.rel (0) target = $region17
    $region16: #{tpu_custom_call.1} parent=1 // pred_region
      %42 = dma.done [#allocation3], 4096
    $region17: #{tpu_custom_call.1} parent=1 // pred_fallthru
      _
    // Predicated region
    $region18: #{tpu_custom_call.1} parent=1 // pred_check
      _
    $region19: #{tpu_custom_call.1} parent=1 // pred_check_branch
      %44 = sbr.rel (0) target = $region21
    $region20: #{tpu_custom_call.1} parent=1 // pred_region
      %45 = dma.done [#allocation6], 2048
    $region21: #{tpu_custom_call.1} parent=1 // pred_fallthru
      _
    %v47 = vld [vmem:[#allocation2] sm:$0xff]
    %v48 = vld [vmem:[#allocation2 + $0x8] sm:$0xff]
    %v49 = vld [vmem:[#allocation2 + $0x10] sm:$0xff]
    %v50 = vld [vmem:[#allocation2 + $0x18] sm:$0xff]
    %v51 = vld [vmem:[#allocation2 + $0x20] sm:$0xff]
    %v52 = vld [vmem:[#allocation2 + $0x28] sm:$0xff]
    %v53 = vld [vmem:[#allocation2 + $0x30] sm:$0xff]
    %v54 = vld [vmem:[#allocation2 + $0x38] sm:$0xff]
    %v55 = vld [vmem:[#allocation2 + $0x40] sm:$0xff]
    %v56 = vld [vmem:[#allocation2 + $0x48] sm:$0xff]
    %v57 = vld [vmem:[#allocation2 + $0x50] sm:$0xff]
    %v58 = vld [vmem:[#allocation2 + $0x58] sm:$0xff]
    %v59 = vld [vmem:[#allocation2 + $0x60] sm:$0xff]
    %v60 = vld [vmem:[#allocation2 + $0x68] sm:$0xff]
    %v61 = vld [vmem:[#allocation2 + $0x70] sm:$0xff]
    %v62 = vld [vmem:[#allocation2 + $0x78] sm:$0xff]
    %v63 = vld [vmem:[#allocation2 + $0x80] sm:$0xff]
    %v64 = vld [vmem:[#allocation2 + $0x88] sm:$0xff]
    %v65 = vld [vmem:[#allocation2 + $0x90] sm:$0xff]
    %v66 = vld [vmem:[#allocation2 + $0x98] sm:$0xff]
    %v67 = vld [vmem:[#allocation2 + $0xa0] sm:$0xff]
    %v68 = vld [vmem:[#allocation2 + $0xa8] sm:$0xff]
    %v69 = vld [vmem:[#allocation2 + $0xb0] sm:$0xff]
    %v70 = vld [vmem:[#allocation2 + $0xb8] sm:$0xff]
    %v71 = vld [vmem:[#allocation2 + $0xc0] sm:$0xff]
    %v72 = vld [vmem:[#allocation2 + $0xc8] sm:$0xff]
    %v73 = vld [vmem:[#allocation2 + $0xd0] sm:$0xff]
    %v74 = vld [vmem:[#allocation2 + $0xd8] sm:$0xff]
    %v75 = vld [vmem:[#allocation2 + $0xe0] sm:$0xff]
    %v76 = vld [vmem:[#allocation2 + $0xe8] sm:$0xff]
    %v77 = vld [vmem:[#allocation2 + $0xf0] sm:$0xff]
    %v78 = vld [vmem:[#allocation2 + $0xf8] sm:$0xff]
    %v79 = vmul.f32 %v47, %v47
    %v80 = vmul.f32 %v48, %v48
    %v81 = vmul.f32 %v49, %v49
    %v82 = vmul.f32 %v50, %v50
    %v83 = vmul.f32 %v51, %v51
    %v84 = vmul.f32 %v52, %v52
    %v85 = vmul.f32 %v53, %v53
    %v86 = vmul.f32 %v54, %v54
    %v87 = vmul.f32 %v55, %v55
    %v88 = vmul.f32 %v56, %v56
    %v89 = vmul.f32 %v57, %v57
    %v90 = vmul.f32 %v58, %v58
    %v91 = vmul.f32 %v59, %v59
    %v92 = vmul.f32 %v60, %v60
    %v93 = vmul.f32 %v61, %v61
    %v94 = vmul.f32 %v62, %v62
    %v95 = vmul.f32 %v63, %v63
    %v96 = vmul.f32 %v64, %v64
    %v97 = vmul.f32 %v65, %v65
    %v98 = vmul.f32 %v66, %v66
    %v99 = vmul.f32 %v67, %v67
    %v100 = vmul.f32 %v68, %v68
    %v101 = vmul.f32 %v69, %v69
    %v102 = vmul.f32 %v70, %v70
    %v103 = vmul.f32 %v71, %v71
    %v104 = vmul.f32 %v72, %v72
    %v105 = vmul.f32 %v73, %v73
    %v106 = vmul.f32 %v74, %v74
    %v107 = vmul.f32 %v75, %v75
    %v108 = vmul.f32 %v76, %v76
    %v109 = vmul.f32 %v77, %v77
    %v110 = vmul.f32 %v78, %v78
    %111 = vadd.xlane.f32.xlu0 %v79
    %v112 = vpop.xlane.xlu0 %111
    %113 = vadd.xlane.f32.xlu0 %v80
    %v114 = vpop.xlane.xlu0 %113
    %115 = vadd.xlane.f32.xlu0 %v81
    %v116 = vpop.xlane.xlu0 %115
    %117 = vadd.xlane.f32.xlu0 %v82
    %v118 = vpop.xlane.xlu0 %117
    %119 = vadd.xlane.f32.xlu0 %v83
    %v120 = vpop.xlane.xlu0 %119
    %121 = vadd.xlane.f32.xlu0 %v84
    %v122 = vpop.xlane.xlu0 %121
    %123 = vadd.xlane.f32.xlu0 %v85
    %v124 = vpop.xlane.xlu0 %123
    %125 = vadd.xlane.f32.xlu0 %v86
    %v126 = vpop.xlane.xlu0 %125
    %127 = vadd.xlane.f32.xlu0 %v87
    %v128 = vpop.xlane.xlu0 %127
    %129 = vadd.xlane.f32.xlu0 %v88
    %v130 = vpop.xlane.xlu0 %129
    %131 = vadd.xlane.f32.xlu0 %v89
    %v132 = vpop.xlane.xlu0 %131
    %133 = vadd.xlane.f32.xlu0 %v90
    %v134 = vpop.xlane.xlu0 %133
    %135 = vadd.xlane.f32.xlu0 %v91
    %v136 = vpop.xlane.xlu0 %135
    %137 = vadd.xlane.f32.xlu0 %v92
    %v138 = vpop.xlane.xlu0 %137
    %139 = vadd.xlane.f32.xlu0 %v93
    %v140 = vpop.xlane.xlu0 %139
    %141 = vadd.xlane.f32.xlu0 %v94
    %v142 = vpop.xlane.xlu0 %141
    %143 = vadd.xlane.f32.xlu0 %v95
    %v144 = vpop.xlane.xlu0 %143
    %145 = vadd.xlane.f32.xlu0 %v96
    %v146 = vpop.xlane.xlu0 %145
    %147 = vadd.xlane.f32.xlu0 %v97
    %v148 = vpop.xlane.xlu0 %147
    %149 = vadd.xlane.f32.xlu0 %v98
    %v150 = vpop.xlane.xlu0 %149
    %151 = vadd.xlane.f32.xlu0 %v99
    %v152 = vpop.xlane.xlu0 %151
    %153 = vadd.xlane.f32.xlu0 %v100
    %v154 = vpop.xlane.xlu0 %153
    %155 = vadd.xlane.f32.xlu0 %v101
    %v156 = vpop.xlane.xlu0 %155
    %157 = vadd.xlane.f32.xlu0 %v102
    %v158 = vpop.xlane.xlu0 %157
    %159 = vadd.xlane.f32.xlu0 %v103
    %v160 = vpop.xlane.xlu0 %159
    %161 = vadd.xlane.f32.xlu0 %v104
    %v162 = vpop.xlane.xlu0 %161
    %163 = vadd.xlane.f32.xlu0 %v105
    %v164 = vpop.xlane.xlu0 %163
    %165 = vadd.xlane.f32.xlu0 %v106
    %v166 = vpop.xlane.xlu0 %165
    %167 = vadd.xlane.f32.xlu0 %v107
    %v168 = vpop.xlane.xlu0 %167
    %169 = vadd.xlane.f32.xlu0 %v108
    %v170 = vpop.xlane.xlu0 %169
    %171 = vadd.xlane.f32.xlu0 %v109
    %v172 = vpop.xlane.xlu0 %171
    %173 = vadd.xlane.f32.xlu0 %v110
    %v174 = vpop.xlane.xlu0 %173
    %v175 = vmax.f32 %v112, 1e-24
    %v176 = vmax.f32 %v114, 1e-24
    %v177 = vmax.f32 %v116, 1e-24
    %v178 = vmax.f32 %v118, 1e-24
    %v179 = vmax.f32 %v120, 1e-24
    %v180 = vmax.f32 %v122, 1e-24
    %v181 = vmax.f32 %v124, 1e-24
    %v182 = vmax.f32 %v126, 1e-24
    %v183 = vmax.f32 %v128, 1e-24
    %v184 = vmax.f32 %v130, 1e-24
    %v185 = vmax.f32 %v132, 1e-24
    %v186 = vmax.f32 %v134, 1e-24
    %v187 = vmax.f32 %v136, 1e-24
    %v188 = vmax.f32 %v138, 1e-24
    %v189 = vmax.f32 %v140, 1e-24
    %v190 = vmax.f32 %v142, 1e-24
    %v191 = vmax.f32 %v144, 1e-24
    %v192 = vmax.f32 %v146, 1e-24
    %v193 = vmax.f32 %v148, 1e-24
    %v194 = vmax.f32 %v150, 1e-24
    %v195 = vmax.f32 %v152, 1e-24
    %v196 = vmax.f32 %v154, 1e-24
    %v197 = vmax.f32 %v156, 1e-24
    %v198 = vmax.f32 %v158, 1e-24
    %v199 = vmax.f32 %v160, 1e-24
    %v200 = vmax.f32 %v162, 1e-24
    %v201 = vmax.f32 %v164, 1e-24
    %v202 = vmax.f32 %v166, 1e-24
    %v203 = vmax.f32 %v168, 1e-24
    %v204 = vmax.f32 %v170, 1e-24
    %v205 = vmax.f32 %v172, 1e-24
    %v206 = vmax.f32 %v174, 1e-24
    %v207 = vrsqrt.pop %v175
    %v208 = vrsqrt.pop %v176
    %v209 = vrsqrt.pop %v177
    %v210 = vrsqrt.pop %v178
    %v211 = vrsqrt.pop %v179
    %v212 = vrsqrt.pop %v180
    %v213 = vrsqrt.pop %v181
    %v214 = vrsqrt.pop %v182
    %v215 = vrsqrt.pop %v183
    %v216 = vrsqrt.pop %v184
    %v217 = vrsqrt.pop %v185
    %v218 = vrsqrt.pop %v186
    %v219 = vrsqrt.pop %v187
    %v220 = vrsqrt.pop %v188
    %v221 = vrsqrt.pop %v189
    %v222 = vrsqrt.pop %v190
    %v223 = vrsqrt.pop %v191
    %v224 = vrsqrt.pop %v192
    %v225 = vrsqrt.pop %v193
    %v226 = vrsqrt.pop %v194
    %v227 = vrsqrt.pop %v195
    %v228 = vrsqrt.pop %v196
    %v229 = vrsqrt.pop %v197
    %v230 = vrsqrt.pop %v198
    %v231 = vrsqrt.pop %v199
    %v232 = vrsqrt.pop %v200
    %v233 = vrsqrt.pop %v201
    %v234 = vrsqrt.pop %v202
    %v235 = vrsqrt.pop %v203
    %v236 = vrsqrt.pop %v204
    %v237 = vrsqrt.pop %v205
    %v238 = vrsqrt.pop %v206
    %v239 = vmul.f32 %v47, %v207
    %v240 = vmul.f32 %v48, %v208
    %v241 = vmul.f32 %v49, %v209
    %v242 = vmul.f32 %v50, %v210
    %v243 = vmul.f32 %v51, %v211
    %v244 = vmul.f32 %v52, %v212
    %v245 = vmul.f32 %v53, %v213
    %v246 = vmul.f32 %v54, %v214
    %v247 = vmul.f32 %v55, %v215
    %v248 = vmul.f32 %v56, %v216
    %v249 = vmul.f32 %v57, %v217
    %v250 = vmul.f32 %v58, %v218
    %v251 = vmul.f32 %v59, %v219
    %v252 = vmul.f32 %v60, %v220
    %v253 = vmul.f32 %v61, %v221
    %v254 = vmul.f32 %v62, %v222
    %v255 = vmul.f32 %v63, %v223
    %v256 = vmul.f32 %v64, %v224
    %v257 = vmul.f32 %v65, %v225
    %v258 = vmul.f32 %v66, %v226
    %v259 = vmul.f32 %v67, %v227
    %v260 = vmul.f32 %v68, %v228
    %v261 = vmul.f32 %v69, %v229
    %v262 = vmul.f32 %v70, %v230
    %v263 = vmul.f32 %v71, %v231
    %v264 = vmul.f32 %v72, %v232
    %v265 = vmul.f32 %v73, %v233
    %v266 = vmul.f32 %v74, %v234
    %v267 = vmul.f32 %v75, %v235
    %v268 = vmul.f32 %v76, %v236
    %v269 = vmul.f32 %v77, %v237
    %v270 = vmul.f32 %v78, %v238
    %v271 = vpack.c.bf16 %v240, %v239
    %v272 = vpack.c.bf16 %v242, %v241
    %v273 = vpack.c.bf16 %v244, %v243
    %v274 = vpack.c.bf16 %v246, %v245
    %v275 = vpack.c.bf16 %v248, %v247
    %v276 = vpack.c.bf16 %v250, %v249
    %v277 = vpack.c.bf16 %v252, %v251
    %v278 = vpack.c.bf16 %v254, %v253
    %v279 = vpack.c.bf16 %v256, %v255
    %v280 = vpack.c.bf16 %v258, %v257
    %v281 = vpack.c.bf16 %v260, %v259
    %v282 = vpack.c.bf16 %v262, %v261
    %v283 = vpack.c.bf16 %v264, %v263
    %v284 = vpack.c.bf16 %v266, %v265
    %v285 = vpack.c.bf16 %v268, %v267
    %v286 = vpack.c.bf16 %v270, %v269
    %v287 = vld [vmem:[#allocation5] sm:$0xff]
    %v288 = vld [vmem:[#allocation5 + $0x8] sm:$0xff]
    %v289 = vld [vmem:[#allocation5 + $0x10] sm:$0xff]
    %v290 = vld [vmem:[#allocation5 + $0x18] sm:$0xff]
    %v291 = vld [vmem:[#allocation5 + $0x20] sm:$0xff]
    %v292 = vld [vmem:[#allocation5 + $0x28] sm:$0xff]
    %v293 = vld [vmem:[#allocation5 + $0x30] sm:$0xff]
    %v294 = vld [vmem:[#allocation5 + $0x38] sm:$0xff]
    %v295 = vld [vmem:[#allocation5 + $0x40] sm:$0xff]
    %v296 = vld [vmem:[#allocation5 + $0x48] sm:$0xff]
    %v297 = vld [vmem:[#allocation5 + $0x50] sm:$0xff]
    %v298 = vld [vmem:[#allocation5 + $0x58] sm:$0xff]
    %v299 = vld [vmem:[#allocation5 + $0x60] sm:$0xff]
    %v300 = vld [vmem:[#allocation5 + $0x68] sm:$0xff]
    %v301 = vld [vmem:[#allocation5 + $0x70] sm:$0xff]
    %v302 = vld [vmem:[#allocation5 + $0x78] sm:$0xff]
    %v303 = vld [vmem:[%s2] sm:$0x3]
    %v305 = vlaneseq
    %v306 = vshrl.u32 %v305, 7
    %v307 = vsub.s32 0, %v306
    %v308 = vrot.slane %v303, %v307
    %v309 = vlaneseq
    %v310 = vshrl.u32 %v309, 7
    %v311 = vsub.s32 1, %v310
    %v312 = vrot.slane %v303, %v311
    %v331 = vunpack.c.l.b16 %v287
    %v332 = vunpack.c.h.b16 %v287
    %v333 = vunpack.c.l.b16 %v288
    %v334 = vunpack.c.h.b16 %v288
    %v335 = vunpack.c.l.b16 %v289
    %v336 = vunpack.c.h.b16 %v289
    %v337 = vunpack.c.l.b16 %v290
    %v338 = vunpack.c.h.b16 %v290
    %v339 = vunpack.c.l.b16 %v291
    %v340 = vunpack.c.h.b16 %v291
    %v341 = vunpack.c.l.b16 %v292
    %v342 = vunpack.c.h.b16 %v292
    %v343 = vunpack.c.l.b16 %v293
    %v344 = vunpack.c.h.b16 %v293
    %v345 = vunpack.c.l.b16 %v294
    %v346 = vunpack.c.h.b16 %v294
    %v347 = vunpack.c.l.b16 %v295
    %v348 = vunpack.c.h.b16 %v295
    %v349 = vunpack.c.l.b16 %v296
    %v350 = vunpack.c.h.b16 %v296
    %v351 = vunpack.c.l.b16 %v297
    %v352 = vunpack.c.h.b16 %v297
    %v353 = vunpack.c.l.b16 %v298
    %v354 = vunpack.c.h.b16 %v298
    %v355 = vunpack.c.l.b16 %v299
    %v356 = vunpack.c.h.b16 %v299
    %v357 = vunpack.c.l.b16 %v300
    %v358 = vunpack.c.h.b16 %v300
    %v359 = vunpack.c.l.b16 %v301
    %v360 = vunpack.c.h.b16 %v301
    %v361 = vunpack.c.l.b16 %v302
    %v362 = vunpack.c.h.b16 %v302
    %v363 = vpack.c.b16 %v333, %v331
    %v364 = vpack.c.b16 %v334, %v332
    %v365 = vpack.c.b16 %v337, %v335
    %v366 = vpack.c.b16 %v338, %v336
    %v367 = vpack.c.b16 %v341, %v339
    %v368 = vpack.c.b16 %v342, %v340
    %v369 = vpack.c.b16 %v345, %v343
    %v370 = vpack.c.b16 %v346, %v344
    %v371 = vpack.c.b16 %v349, %v347
    %v372 = vpack.c.b16 %v350, %v348
    %v373 = vpack.c.b16 %v353, %v351
    %v374 = vpack.c.b16 %v354, %v352
    %v375 = vpack.c.b16 %v357, %v355
    %v376 = vpack.c.b16 %v358, %v356
    %v377 = vpack.c.b16 %v361, %v359
    %v378 = vpack.c.b16 %v362, %v360
    %395 = vmatprep.subr.bf16.mxu0 %v364
    %396 = vmatpush1.bf16.msra.mxu0 %v363
    %397 = vmatprep.subr.bf16.mxu0 %v366
    %398 = vmatpush1.bf16.msra.mxu0 %v365
    %399 = vmatprep.subr.bf16.mxu0 %v368
    %400 = vmatpush1.bf16.msra.mxu0 %v367
    %401 = vmatprep.subr.bf16.mxu0 %v370
    %402 = vmatpush1.bf16.msra.mxu0 %v369
    %403 = vmatprep.subr.bf16.mxu0 %v372
    %404 = vmatpush1.bf16.msra.mxu0 %v371
    %405 = vmatprep.subr.bf16.mxu0 %v374
    %406 = vmatpush1.bf16.msra.mxu0 %v373
    %407 = vmatprep.subr.bf16.mxu0 %v376
    %408 = vmatpush1.bf16.msra.mxu0 %v375
    %409 = vmatprep.subr.bf16.mxu0 %v378
    %410 = vmatpush1.bf16.msra.mxu0 %v377
    %411 = vmatprep.subr.bf16.mxu0 0
    %412 = vmatpush1.bf16.msra.mxu0 0
    %413 = vmatprep.subr.bf16.mxu0 0
    %414 = vmatpush1.bf16.msra.mxu0 0
    %415 = vmatprep.subr.bf16.mxu0 0
    %416 = vmatpush1.bf16.msra.mxu0 0
    %417 = vmatprep.subr.bf16.mxu0 0
    %418 = vmatpush1.bf16.msra.mxu0 0
    %419 = vmatprep.subr.bf16.mxu0 0
    %420 = vmatpush1.bf16.msra.mxu0 0
    %421 = vmatprep.subr.bf16.mxu0 0
    %422 = vmatpush1.bf16.msra.mxu0 0
    %423 = vmatprep.subr.bf16.mxu0 0
    %424 = vmatpush1.bf16.msra.mxu0 0
    %425 = vmatprep.subr.bf16.mxu0 0
    %426 = vmatpush1.bf16.msra.mxu0 0
    %427 = vmatprep.mubr.bf16.mxu0 0
    %428 = vmatmul.mubr.bf16.gmra.mrb[0].mxu0 %v271
    %v429 = vpop.f32.mrb[0].mxu0
    %v430 = vadd.f32 %v308, %v429
    %v431 = vpop.f32.mrb[0].mxu0
    %v432 = vadd.f32 %v312, %v431
    %v433 = vpop.f32.mrb[0].mxu0
    %v434 = vadd.f32 %v308, %v433
    %v435 = vpop.f32.mrb[0].mxu0
    %v436 = vadd.f32 %v312, %v435
    %437 = vmatprep.mubr.bf16.mxu0 0
    %438 = vmatmul.mubr.bf16.gmra.mrb[0].mxu0 %v272
    %v439 = vpop.f32.mrb[0].mxu0
    %v440 = vadd.f32 %v308, %v439
    %v441 = vpop.f32.mrb[0].mxu0
    %v442 = vadd.f32 %v312, %v441
    %v443 = vpop.f32.mrb[0].mxu0
    %v444 = vadd.f32 %v308, %v443
    %v445 = vpop.f32.mrb[0].mxu0
    %v446 = vadd.f32 %v312, %v445
    %447 = vmatprep.mubr.bf16.mxu0 0
    %448 = vmatmul.mubr.bf16.gmra.mrb[0].mxu0 %v273
    %v449 = vpop.f32.mrb[0].mxu0
    %v450 = vadd.f32 %v308, %v449
    %v451 = vpop.f32.mrb[0].mxu0
    %v452 = vadd.f32 %v312, %v451
    %v453 = vpop.f32.mrb[0].mxu0
    %v454 = vadd.f32 %v308, %v453
    %v455 = vpop.f32.mrb[0].mxu0
    %v456 = vadd.f32 %v312, %v455
    %457 = vmatprep.mubr.bf16.mxu0 0
    %458 = vmatmul.mubr.bf16.gmra.mrb[0].mxu0 %v274
    %v459 = vpop.f32.mrb[0].mxu0
    %v460 = vadd.f32 %v308, %v459
    %v461 = vpop.f32.mrb[0].mxu0
    %v462 = vadd.f32 %v312, %v461
    %v463 = vpop.f32.mrb[0].mxu0
    %v464 = vadd.f32 %v308, %v463
    %v465 = vpop.f32.mrb[0].mxu0
    %v466 = vadd.f32 %v312, %v465
    %467 = vmatprep.mubr.bf16.mxu0 0
    %468 = vmatmul.mubr.bf16.gmra.mrb[0].mxu0 %v275
    %v469 = vpop.f32.mrb[0].mxu0
    %v470 = vadd.f32 %v308, %v469
    %v471 = vpop.f32.mrb[0].mxu0
    %v472 = vadd.f32 %v312, %v471
    %v473 = vpop.f32.mrb[0].mxu0
    %v474 = vadd.f32 %v308, %v473
    %v475 = vpop.f32.mrb[0].mxu0
    %v476 = vadd.f32 %v312, %v475
    %477 = vmatprep.mubr.bf16.mxu0 0
    %478 = vmatmul.mubr.bf16.gmra.mrb[0].mxu0 %v276
    %v479 = vpop.f32.mrb[0].mxu0
    %v480 = vadd.f32 %v308, %v479
    %v481 = vpop.f32.mrb[0].mxu0
    %v482 = vadd.f32 %v312, %v481
    %v483 = vpop.f32.mrb[0].mxu0
    %v484 = vadd.f32 %v308, %v483
    %v485 = vpop.f32.mrb[0].mxu0
    %v486 = vadd.f32 %v312, %v485
    %487 = vmatprep.mubr.bf16.mxu0 0
    %488 = vmatmul.mubr.bf16.gmra.mrb[0].mxu0 %v277
    %v489 = vpop.f32.mrb[0].mxu0
    %v490 = vadd.f32 %v308, %v489
    %v491 = vpop.f32.mrb[0].mxu0
    %v492 = vadd.f32 %v312, %v491
    %v493 = vpop.f32.mrb[0].mxu0
    %v494 = vadd.f32 %v308, %v493
    %v495 = vpop.f32.mrb[0].mxu0
    %v496 = vadd.f32 %v312, %v495
    %497 = vmatprep.mubr.bf16.mxu0 0
    %498 = vmatmul.mubr.bf16.gmra.mrb[0].mxu0 %v278
    %v499 = vpop.f32.mrb[0].mxu0
    %v500 = vadd.f32 %v308, %v499
    %v501 = vpop.f32.mrb[0].mxu0
    %v502 = vadd.f32 %v312, %v501
    %v503 = vpop.f32.mrb[0].mxu0
    %v504 = vadd.f32 %v308, %v503
    %v505 = vpop.f32.mrb[0].mxu0
    %v506 = vadd.f32 %v312, %v505
    %507 = vmatprep.mubr.bf16.mxu0 0
    %508 = vmatmul.mubr.bf16.gmra.mrb[0].mxu0 %v279
    %v509 = vpop.f32.mrb[0].mxu0
    %v510 = vadd.f32 %v308, %v509
    %v511 = vpop.f32.mrb[0].mxu0
    %v512 = vadd.f32 %v312, %v511
    %v513 = vpop.f32.mrb[0].mxu0
    %v514 = vadd.f32 %v308, %v513
    %v515 = vpop.f32.mrb[0].mxu0
    %v516 = vadd.f32 %v312, %v515
    %517 = vmatprep.mubr.bf16.mxu0 0
    %518 = vmatmul.mubr.bf16.gmra.mrb[0].mxu0 %v280
    %v519 = vpop.f32.mrb[0].mxu0
    %v520 = vadd.f32 %v308, %v519
    %v521 = vpop.f32.mrb[0].mxu0
    %v522 = vadd.f32 %v312, %v521
    %v523 = vpop.f32.mrb[0].mxu0
    %v524 = vadd.f32 %v308, %v523
    %v525 = vpop.f32.mrb[0].mxu0
    %v526 = vadd.f32 %v312, %v525
    %527 = vmatprep.mubr.bf16.mxu0 0
    %528 = vmatmul.mubr.bf16.gmra.mrb[0].mxu0 %v281
    %v529 = vpop.f32.mrb[0].mxu0
    %v530 = vadd.f32 %v308, %v529
    %v531 = vpop.f32.mrb[0].mxu0
    %v532 = vadd.f32 %v312, %v531
    %v533 = vpop.f32.mrb[0].mxu0
    %v534 = vadd.f32 %v308, %v533
    %v535 = vpop.f32.mrb[0].mxu0
    %v536 = vadd.f32 %v312, %v535
    %537 = vmatprep.mubr.bf16.mxu0 0
    %538 = vmatmul.mubr.bf16.gmra.mrb[0].mxu0 %v282
    %v539 = vpop.f32.mrb[0].mxu0
    %v540 = vadd.f32 %v308, %v539
    %v541 = vpop.f32.mrb[0].mxu0
    %v542 = vadd.f32 %v312, %v541
    %v543 = vpop.f32.mrb[0].mxu0
    %v544 = vadd.f32 %v308, %v543
    %v545 = vpop.f32.mrb[0].mxu0
    %v546 = vadd.f32 %v312, %v545
    %547 = vmatprep.mubr.bf16.mxu0 0
    %548 = vmatmul.mubr.bf16.gmra.mrb[0].mxu0 %v283
    %v549 = vpop.f32.mrb[0].mxu0
    %v550 = vadd.f32 %v308, %v549
    %v551 = vpop.f32.mrb[0].mxu0
    %v552 = vadd.f32 %v312, %v551
    %v553 = vpop.f32.mrb[0].mxu0
    %v554 = vadd.f32 %v308, %v553
    %v555 = vpop.f32.mrb[0].mxu0
    %v556 = vadd.f32 %v312, %v555
    %557 = vmatprep.mubr.bf16.mxu0 0
    %558 = vmatmul.mubr.bf16.gmra.mrb[0].mxu0 %v284
    %v559 = vpop.f32.mrb[0].mxu0
    %v560 = vadd.f32 %v308, %v559
    %v561 = vpop.f32.mrb[0].mxu0
    %v562 = vadd.f32 %v312, %v561
    %v563 = vpop.f32.mrb[0].mxu0
    %v564 = vadd.f32 %v308, %v563
    %v565 = vpop.f32.mrb[0].mxu0
    %v566 = vadd.f32 %v312, %v565
    %567 = vmatprep.mubr.bf16.mxu0 0
    %568 = vmatmul.mubr.bf16.gmra.mrb[0].mxu0 %v285
    %v569 = vpop.f32.mrb[0].mxu0
    %v570 = vadd.f32 %v308, %v569
    %v571 = vpop.f32.mrb[0].mxu0
    %v572 = vadd.f32 %v312, %v571
    %v573 = vpop.f32.mrb[0].mxu0
    %v574 = vadd.f32 %v308, %v573
    %v575 = vpop.f32.mrb[0].mxu0
    %v576 = vadd.f32 %v312, %v575
    %577 = vmatprep.mubr.bf16.mxu0 0
    %578 = vmatmul.mubr.bf16.gmra.mrb[0].mxu0 %v286
    %v579 = vpop.f32.mrb[0].mxu0
    %v580 = vadd.f32 %v308, %v579
    %v581 = vpop.f32.mrb[0].mxu0
    %v582 = vadd.f32 %v312, %v581
    %v583 = vpop.f32.mrb[0].mxu0
    %v584 = vadd.f32 %v308, %v583
    %v585 = vpop.f32.mrb[0].mxu0
    %v586 = vadd.f32 %v312, %v585
    %587 = vdwg.mxu0
    %v588 = vpack.c.bf16 %v434, %v430
    %v589 = vpack.c.bf16 %v444, %v440
    %v590 = vpack.c.bf16 %v454, %v450
    %v591 = vpack.c.bf16 %v464, %v460
    %v592 = vpack.c.bf16 %v474, %v470
    %v593 = vpack.c.bf16 %v484, %v480
    %v594 = vpack.c.bf16 %v494, %v490
    %v595 = vpack.c.bf16 %v504, %v500
    %v596 = vpack.c.bf16 %v514, %v510
    %v597 = vpack.c.bf16 %v524, %v520
    %v598 = vpack.c.bf16 %v534, %v530
    %v599 = vpack.c.bf16 %v544, %v540
    %v600 = vpack.c.bf16 %v554, %v550
    %v601 = vpack.c.bf16 %v564, %v560
    %v602 = vpack.c.bf16 %v574, %v570
    %v603 = vpack.c.bf16 %v584, %v580
    %v620 = vunpack.c.l.b16 %v588
    %v621 = vunpack.c.h.b16 %v588
    %v622 = vunpack.c.l.b16 %v589
    %v623 = vunpack.c.h.b16 %v589
    %v624 = vunpack.c.l.b16 %v590
    %v625 = vunpack.c.h.b16 %v590
    %v626 = vunpack.c.l.b16 %v591
    %v627 = vunpack.c.h.b16 %v591
    %v628 = vunpack.c.l.b16 %v592
    %v629 = vunpack.c.h.b16 %v592
    %v630 = vunpack.c.l.b16 %v593
    %v631 = vunpack.c.h.b16 %v593
    %v632 = vunpack.c.l.b16 %v594
    %v633 = vunpack.c.h.b16 %v594
    %v634 = vunpack.c.l.b16 %v595
    %v635 = vunpack.c.h.b16 %v595
    %v636 = vunpack.c.l.b16 %v596
    %v637 = vunpack.c.h.b16 %v596
    %v638 = vunpack.c.l.b16 %v597
    %v639 = vunpack.c.h.b16 %v597
    %v640 = vunpack.c.l.b16 %v598
    %v641 = vunpack.c.h.b16 %v598
    %v642 = vunpack.c.l.b16 %v599
    %v643 = vunpack.c.h.b16 %v599
    %v644 = vunpack.c.l.b16 %v600
    %v645 = vunpack.c.h.b16 %v600
    %v646 = vunpack.c.l.b16 %v601
    %v647 = vunpack.c.h.b16 %v601
    %v648 = vunpack.c.l.b16 %v602
    %v649 = vunpack.c.h.b16 %v602
    %v650 = vunpack.c.l.b16 %v603
    %v651 = vunpack.c.h.b16 %v603
    %v652 = vpack.c.b16 %v620, %v620
    %v653 = vpack.c.b16 %v621, %v621
    %v654 = vpack.c.b16 %v622, %v622
    %v655 = vpack.c.b16 %v623, %v623
    %v656 = vpack.c.b16 %v624, %v624
    %v657 = vpack.c.b16 %v625, %v625
    %v658 = vpack.c.b16 %v626, %v626
    %v659 = vpack.c.b16 %v627, %v627
    %v660 = vpack.c.b16 %v628, %v628
    %v661 = vpack.c.b16 %v629, %v629
    %v662 = vpack.c.b16 %v630, %v630
    %v663 = vpack.c.b16 %v631, %v631
    %v664 = vpack.c.b16 %v632, %v632
    %v665 = vpack.c.b16 %v633, %v633
    %v666 = vpack.c.b16 %v634, %v634
    %v667 = vpack.c.b16 %v635, %v635
    %v668 = vpack.c.b16 %v636, %v636
    %v669 = vpack.c.b16 %v637, %v637
    %v670 = vpack.c.b16 %v638, %v638
    %v671 = vpack.c.b16 %v639, %v639
    %v672 = vpack.c.b16 %v640, %v640
    %v673 = vpack.c.b16 %v641, %v641
    %v674 = vpack.c.b16 %v642, %v642
    %v675 = vpack.c.b16 %v643, %v643
    %v676 = vpack.c.b16 %v644, %v644
    %v677 = vpack.c.b16 %v645, %v645
    %v678 = vpack.c.b16 %v646, %v646
    %v679 = vpack.c.b16 %v647, %v647
    %v680 = vpack.c.b16 %v648, %v648
    %v681 = vpack.c.b16 %v649, %v649
    %v682 = vpack.c.b16 %v650, %v650
    %v683 = vpack.c.b16 %v651, %v651
    %716 = vst [vmem:[#allocation7] sm:$0xf] %v652
    %717 = vst [vmem:[#allocation7 + $0x4] sm:$0xf] %v653
    %718 = vst [vmem:[#allocation7 + $0x8] sm:$0xf] %v654
    %719 = vst [vmem:[#allocation7 + $0xc] sm:$0xf] %v655
    %720 = vst [vmem:[#allocation7 + $0x10] sm:$0xf] %v656
    %721 = vst [vmem:[#allocation7 + $0x14] sm:$0xf] %v657
    %722 = vst [vmem:[#allocation7 + $0x18] sm:$0xf] %v658
    %723 = vst [vmem:[#allocation7 + $0x1c] sm:$0xf] %v659
    %724 = vst [vmem:[#allocation7 + $0x20] sm:$0xf] %v660
    %725 = vst [vmem:[#allocation7 + $0x24] sm:$0xf] %v661
    %726 = vst [vmem:[#allocation7 + $0x28] sm:$0xf] %v662
    %727 = vst [vmem:[#allocation7 + $0x2c] sm:$0xf] %v663
    %728 = vst [vmem:[#allocation7 + $0x30] sm:$0xf] %v664
    %729 = vst [vmem:[#allocation7 + $0x34] sm:$0xf] %v665
    %730 = vst [vmem:[#allocation7 + $0x38] sm:$0xf] %v666
    %731 = vst [vmem:[#allocation7 + $0x3c] sm:$0xf] %v667
    %732 = vst [vmem:[#allocation7 + $0x40] sm:$0xf] %v668
    %733 = vst [vmem:[#allocation7 + $0x44] sm:$0xf] %v669
    %734 = vst [vmem:[#allocation7 + $0x48] sm:$0xf] %v670
    %735 = vst [vmem:[#allocation7 + $0x4c] sm:$0xf] %v671
    %736 = vst [vmem:[#allocation7 + $0x50] sm:$0xf] %v672
    %737 = vst [vmem:[#allocation7 + $0x54] sm:$0xf] %v673
    %738 = vst [vmem:[#allocation7 + $0x58] sm:$0xf] %v674
    %739 = vst [vmem:[#allocation7 + $0x5c] sm:$0xf] %v675
    %740 = vst [vmem:[#allocation7 + $0x60] sm:$0xf] %v676
    %741 = vst [vmem:[#allocation7 + $0x64] sm:$0xf] %v677
    %742 = vst [vmem:[#allocation7 + $0x68] sm:$0xf] %v678
    %743 = vst [vmem:[#allocation7 + $0x6c] sm:$0xf] %v679
    %744 = vst [vmem:[#allocation7 + $0x70] sm:$0xf] %v680
    %745 = vst [vmem:[#allocation7 + $0x74] sm:$0xf] %v681
    %746 = vst [vmem:[#allocation7 + $0x78] sm:$0xf] %v682
    %747 = vst [vmem:[#allocation7 + $0x7c] sm:$0xf] %v683
    %748 = vst [vmem:[#allocation8] sm:$0xff] %v432
    %749 = vst [vmem:[#allocation8 + $0x8] sm:$0xff] %v436
    %750 = vst [vmem:[#allocation8 + $0x10] sm:$0xff] %v442
    %751 = vst [vmem:[#allocation8 + $0x18] sm:$0xff] %v446
    %752 = vst [vmem:[#allocation8 + $0x20] sm:$0xff] %v452
    %753 = vst [vmem:[#allocation8 + $0x28] sm:$0xff] %v456
    %754 = vst [vmem:[#allocation8 + $0x30] sm:$0xff] %v462
    %755 = vst [vmem:[#allocation8 + $0x38] sm:$0xff] %v466
    %756 = vst [vmem:[#allocation8 + $0x40] sm:$0xff] %v472
    %757 = vst [vmem:[#allocation8 + $0x48] sm:$0xff] %v476
    %758 = vst [vmem:[#allocation8 + $0x50] sm:$0xff] %v482
    %759 = vst [vmem:[#allocation8 + $0x58] sm:$0xff] %v486
    %760 = vst [vmem:[#allocation8 + $0x60] sm:$0xff] %v492
    %761 = vst [vmem:[#allocation8 + $0x68] sm:$0xff] %v496
    %762 = vst [vmem:[#allocation8 + $0x70] sm:$0xff] %v502
    %763 = vst [vmem:[#allocation8 + $0x78] sm:$0xff] %v506
    %764 = vst [vmem:[#allocation8 + $0x80] sm:$0xff] %v512
    %765 = vst [vmem:[#allocation8 + $0x88] sm:$0xff] %v516
    %766 = vst [vmem:[#allocation8 + $0x90] sm:$0xff] %v522
    %767 = vst [vmem:[#allocation8 + $0x98] sm:$0xff] %v526
    %768 = vst [vmem:[#allocation8 + $0xa0] sm:$0xff] %v532
    %769 = vst [vmem:[#allocation8 + $0xa8] sm:$0xff] %v536
    %770 = vst [vmem:[#allocation8 + $0xb0] sm:$0xff] %v542
    %771 = vst [vmem:[#allocation8 + $0xb8] sm:$0xff] %v546
    %772 = vst [vmem:[#allocation8 + $0xc0] sm:$0xff] %v552
    %773 = vst [vmem:[#allocation8 + $0xc8] sm:$0xff] %v556
    %774 = vst [vmem:[#allocation8 + $0xd0] sm:$0xff] %v562
    %775 = vst [vmem:[#allocation8 + $0xd8] sm:$0xff] %v566
    %776 = vst [vmem:[#allocation8 + $0xe0] sm:$0xff] %v572
    %777 = vst [vmem:[#allocation8 + $0xe8] sm:$0xff] %v576
    %778 = vst [vmem:[#allocation8 + $0xf0] sm:$0xff] %v582
    %779 = vst [vmem:[#allocation8 + $0xf8] sm:$0xff] %v586
    // Predicated region
    $region22: #{tpu_custom_call.1} parent=1 // pred_check
      _
    $region23: #{tpu_custom_call.1} parent=1 // pred_check_branch
      %781 = sbr.rel (0) target = $region25
    $region24: #{tpu_custom_call.1} parent=1 // pred_region
      %s783 = ssub.s32 2048, 2048
      %784 = vsyncadd [#allocation4], %s783
      %s785 = sshll.u32 [#allocation7], 4
      %s786 = int_to_ptr.vmem [resolvable:$true] %s785
      %791 = dma.vmem_to_hbm [thread:$0]  %s786, 2048, %s3, [#allocation4], 64, 64, 4
    $region25: #{tpu_custom_call.1} parent=1 // pred_fallthru
      _
    // Predicated region
    $region26: #{tpu_custom_call.1} parent=1 // pred_check
      _
    $region27: #{tpu_custom_call.1} parent=1 // pred_check_branch
      %793 = sbr.rel (0) target = $region29
    $region28: #{tpu_custom_call.1} parent=1 // pred_region
      %s795 = ssub.s32 4096, 4096
      %796 = vsyncadd [#allocation9], %s795
      %s797 = sshll.u32 [#allocation8], 4
      %s798 = int_to_ptr.vmem [resolvable:$true] %s797
      %803 = dma.vmem_to_hbm [thread:$0]  %s798, 4096, %s4, [#allocation9], 128, 128, 8
    $region29: #{tpu_custom_call.1} parent=1 // pred_fallthru
      _
    // Predicated region
    $region30: #{tpu_custom_call.1} parent=1 // pred_check
      _
    $region31: #{tpu_custom_call.1} parent=1 // pred_check_branch
      %805 = sbr.rel (0) target = $region33
    $region32: #{tpu_custom_call.1} parent=1 // pred_region
      %806 = dma.done [#allocation4], 2048
    $region33: #{tpu_custom_call.1} parent=1 // pred_fallthru
      _
    // Predicated region
    $region34: #{tpu_custom_call.1} parent=1 // pred_check
      _
    $region35: #{tpu_custom_call.1} parent=1 // pred_check_branch
      %808 = sbr.rel (0) target = $region37
    $region36: #{tpu_custom_call.1} parent=1 // pred_region
      %809 = dma.done [#allocation9], 4096
    $region37: #{tpu_custom_call.1} parent=1 // pred_fallthru
      _
    %810 = vsyncpa [#allocation3], 1
    %811 = vsyncpa [#allocation6], 1
    %812 = vsyncpa [#allocation4], 1
    %813 = vsyncpa [#allocation9], 1

</llo_original>
